<compile_context>
chip_gen: v7x
topology: tpu7x:2x2x1
jax: 0.10.0
libtpu: 0.0.40
codegen_flags: <defaults>
</compile_context>

<pallas_src>
import functools

import jax
import jax.numpy as jnp
from jax.experimental import pallas as pl
from jax.experimental.pallas import tpu as pltpu


def _fsenet_kernel(x_ref, wband_ref, wmean_ref, brow_ref, o_ref, *, cb, h):
    """One block of Cb input channels, fully lane-dense.

    x_ref:     (Cb*H, L)     input rows (C and H folded together on sublanes)
    wband_ref: (L, O*Lo)     banded Conv1d weights (valid conv as a matmul)
    wmean_ref: (L, O*Lo)     per-segment column sums of wband, * 1/(H*Lo)
    brow_ref:  (1, O*Lo)     bias, repeated across each o's Lo-lane segment
    o_ref:     (Cb, H, O*Lo) lane-dense output slab
    """
    x2 = x_ref[...]                                        # (Cb*H, L)

    # K-tap valid conv for all O output channels as a single MXU matmul; the
    # lane axis of every intermediate and of the store is O*Lo (lane-dense).
    conv2 = jnp.dot(x2, wband_ref[...],
                    preferred_element_type=jnp.float32,
                    precision=jax.lax.Precision.HIGHEST)
    conv2 = conv2 + brow_ref[...]                          # (Cb*H, O*Lo)

    # Per-(c, o) mean of conv over (H, Lo), already broadcast across each o's
    # Lo-lane segment:  mean = (sum_h x) @ Wmean + bias  (1/(H*Lo) folded in).
    xsum = jnp.sum(x2.reshape(cb, h, x2.shape[-1]), axis=1)         # (Cb, L)
    mean = jnp.dot(xsum, wmean_ref[...],
                   preferred_element_type=jnp.float32,
                   precision=jax.lax.Precision.HIGHEST)
    mean = mean + brow_ref[...]                            # (Cb, O*Lo)

    conv3 = conv2.reshape(cb, h, conv2.shape[-1])          # (Cb, H, O*Lo)
    o_ref[...] = jnp.tanh(conv3 * mean[:, None, :]).astype(o_ref.dtype)


def _choose_block_channels(C, H, L, M, budget_bytes=8 * 1024 * 1024):
    """Largest divisor of C whose double-buffered in+out f32 blocks fit budget.

    The 8 MiB default leaves ample headroom under the 32 MiB scoped-VMEM
    default and under v7x's smaller 64 MiB physical VMEM; on v5e/v6e the budget
    (and vmem_limit_bytes) can be raised if C/H/L grow to realistic sizes.
    """
    per_c = 2 * 4 * (H * L + H * M)      # double-buffered f32 input + output
    best = 1
    for d in range(1, C + 1):
        fits = d * per_c <= budget_bytes
        # When d < C the input block's sublane dim is d*H -> keep it 8-aligned.
        aligned = (d == C) or ((d * H) % 8 == 0)
        if C % d == 0 and fits and aligned:
            best = d
    return best


def fsenet_forward(x, conv_w, conv_b, *, kernel_size: int):
    """x: (C, H, L) f32; conv_w: (O, 1, K); conv_b: (O,). Returns (out, H, Lo)."""
    C, H, L = x.shape
    O = conv_w.shape[0]
    K = kernel_size
    Lo = L - K + 1
    M = O * Lo

    x = x.astype(jnp.float32)
    w2d = conv_w.reshape(O, K).astype(jnp.float32)
    b1d = conv_b.reshape(O).astype(jnp.float32)

    # ---- host/XLA-side precompute (runs once, outside the kernel) -----------
    # Banded weight matrix: Wband[j, o*Lo + l] = w[o, j - l] if 0 <= j - l < K.
    m_idx = jnp.arange(M)
    o_of_m = m_idx // Lo                                   # (M,)
    l_of_m = m_idx % Lo                                    # (M,)
    k_idx = jnp.arange(L)[:, None] - l_of_m[None, :]       # (L, M)
    valid = (k_idx >= 0) & (k_idx < K)
    wband = jnp.where(
        valid, w2d[o_of_m[None, :], jnp.clip(k_idx, 0, K - 1)], 0.0)
    # Wmean: column sums of Wband over each o's Lo-lane segment, broadcast back
    # across the segment, with the 1/(H*Lo) mean factor folded in.
    wmean = wband.reshape(L, O, Lo).sum(axis=2, keepdims=True) / float(H * Lo)
    wmean = jnp.broadcast_to(wmean, (L, O, Lo)).reshape(L, M)
    # Bias replicated across each o's Lo-lane segment -> (1, M).
    brow = jnp.repeat(b1d, Lo)[None, :]

    x2d = x.reshape(C * H, L)

    cb = _choose_block_channels(C, H, L, M)
    grid = (C // cb,)

    out_flat = pl.pallas_call(
        functools.partial(_fsenet_kernel, cb=cb, h=H),
        out_shape=jax.ShapeDtypeStruct((C, H, M), jnp.float32),
        grid_spec=pltpu.PrefetchScalarGridSpec(
            num_scalar_prefetch=0,
            grid=grid,
            in_specs=[
                pl.BlockSpec((cb * H, L), lambda i: (i, 0)),
                pl.BlockSpec((L, M), lambda i: (0, 0)),    # constant -> DMA'd once
                pl.BlockSpec((L, M), lambda i: (0, 0)),    # constant -> DMA'd once
                pl.BlockSpec((1, M), lambda i: (0, 0)),    # constant -> DMA'd once
            ],
            out_specs=pl.BlockSpec((cb, H, M), lambda i: (i, 0, 0)),
        ),
        compiler_params=pltpu.CompilerParams(
            dimension_semantics=("parallel",)),
    )(x2d, wband, wmean, brow)

    # Layout plumbing back to the PyTorch output shape (C, O, H, Lo).
    out = out_flat.reshape(C, H, O, Lo).transpose(0, 2, 1, 3)
    return out, H, Lo


def fsenet_reference(x, conv_w, conv_b, *, kernel_size: int):
    """Pure-JAX reference matching the PyTorch forward (for validation)."""
    C, H, L = x.shape
    O = conv_w.shape[0]
    K = kernel_size
    Lo = L - K + 1
    w = conv_w.reshape(O, K)
    outs = []
    for i in range(C):
        xi = x[i]                                              # (H, L)
        conv = jnp.zeros((O, H, Lo), jnp.float32)
        for k in range(K):
            conv = conv + w[:, k][:, None, None] * xi[None, :, k:k + Lo]
        conv = conv + conv_b[:, None, None]
        wmean = jnp.mean(conv, axis=(1, 2), keepdims=True)
        outs.append(jnp.tanh(conv * wmean))
    return jnp.stack(outs, axis=0)


if __name__ == "__main__":
    out_channels = 4
    kernel_size = 3

    C, H, L = 2, 8, 16          # x: (C, H, F+1) with F = 15

    key = jax.random.PRNGKey(0)
    kx, kw, kb = jax.random.split(key, 3)

    x = jax.random.normal(kx, (C, H, L), dtype=jnp.float32)
    # Deterministic synthetic Conv1d(1, out_channels, kernel_size) params.
    conv_w = jax.random.normal(kw, (out_channels, 1, kernel_size),
                               dtype=jnp.float32) * 0.5
    conv_b = jax.random.normal(kb, (out_channels,), dtype=jnp.float32) * 0.1

    out, h_dim, lo_dim = fsenet_forward(x, conv_w, conv_b,
                                        kernel_size=kernel_size)
    out = jax.block_until_ready(out)

    ref = fsenet_reference(x, conv_w, conv_b, kernel_size=kernel_size)
    Lo = L - kernel_size + 1
    assert out.shape == (C, out_channels, H, Lo), out.shape
    assert h_dim == H and lo_dim == Lo
    assert jnp.allclose(out, ref, atol=1e-4, rtol=1e-4), \
        float(jnp.max(jnp.abs(out - ref)))

    print("KERNEL_OK")
</pallas_src>

<mosaic_0001>
module attributes {stable_mosaic.version = 11 : i64} {
  func.func @_fsenet_kernel(%arg0: i32, %arg1: memref<16x16xf32, #tpu.memory_space<vmem>>, %arg2: memref<16x56xf32, #tpu.memory_space<vmem>>, %arg3: memref<16x56xf32, #tpu.memory_space<vmem>>, %arg4: memref<1x56xf32, #tpu.memory_space<vmem>>, %arg5: memref<2x8x56xf32, #tpu.memory_space<vmem>>) attributes {dimension_semantics = [#tpu.dimension_semantics<parallel>], iteration_bounds = array<i64: 1>, scalar_prefetch = 0 : i64, scratch_operands = 0 : i64, tpu.core_type = #tpu.core_type<tc>, window_params = [{transform_indices = @transform_0, window_bounds = array<i64: 16, 16>}, {pipeline_mode = #tpu.pipeline_mode<synchronous>, transform_indices = @transform_1, window_bounds = array<i64: 16, 56>}, {pipeline_mode = #tpu.pipeline_mode<synchronous>, transform_indices = @transform_2, window_bounds = array<i64: 16, 56>}, {pipeline_mode = #tpu.pipeline_mode<synchronous>, transform_indices = @transform_3, window_bounds = array<i64: 1, 56>}, {transform_indices = @transform_4, window_bounds = array<i64: 2, 8, 56>}]} {
    %c0 = arith.constant 0 : index
    %c0_0 = arith.constant 0 : index
    %0 = vector.load %arg1[%c0, %c0_0] : memref<16x16xf32, #tpu.memory_space<vmem>>, vector<16x16xf32>
    %c0_1 = arith.constant 0 : index
    %c0_2 = arith.constant 0 : index
    %1 = vector.load %arg2[%c0_1, %c0_2] : memref<16x56xf32, #tpu.memory_space<vmem>>, vector<16x56xf32>
    %cst = arith.constant dense<0.000000e+00> : vector<16x56xf32>
    %2 = tpu.matmul %0, %1, %cst {dimension_numbers = #tpu.dot_dimension_numbers<[1], [0], [0], [1], [0, 0, 1, 1], [], []>, precision = #tpu.contract_precision<fp32>} : vector<16x16xf32>, vector<16x56xf32>, vector<16x56xf32> -> vector<16x56xf32>
    %c0_3 = arith.constant 0 : index
    %c0_4 = arith.constant 0 : index
    %3 = vector.load %arg4[%c0_3, %c0_4] : memref<1x56xf32, #tpu.memory_space<vmem>>, vector<1x56xf32>
    %4 = vector.broadcast %3 : vector<1x56xf32> to vector<16x56xf32>
    %5 = arith.addf %2, %4 : vector<16x56xf32>
    %6 = vector.shape_cast %0 : vector<16x16xf32> to vector<2x8x16xf32>
    %cst_5 = arith.constant dense<0.000000e+00> : vector<2x16xf32>
    %7 = vector.multi_reduction <add>, %6, %cst_5 [1] : vector<2x8x16xf32> to vector<2x16xf32>
    %c0_6 = arith.constant 0 : index
    %c0_7 = arith.constant 0 : index
    %8 = vector.load %arg3[%c0_6, %c0_7] : memref<16x56xf32, #tpu.memory_space<vmem>>, vector<16x56xf32>
    %cst_8 = arith.constant dense<0.000000e+00> : vector<2x56xf32>
    %9 = tpu.matmul %7, %8, %cst_8 {dimension_numbers = #tpu.dot_dimension_numbers<[1], [0], [0], [1], [0, 0, 1, 1], [], []>, precision = #tpu.contract_precision<fp32>} : vector<2x16xf32>, vector<16x56xf32>, vector<2x56xf32> -> vector<2x56xf32>
    %c0_9 = arith.constant 0 : index
    %c0_10 = arith.constant 0 : index
    %10 = vector.load %arg4[%c0_9, %c0_10] : memref<1x56xf32, #tpu.memory_space<vmem>>, vector<1x56xf32>
    %11 = vector.broadcast %10 : vector<1x56xf32> to vector<2x56xf32>
    %12 = arith.addf %9, %11 : vector<2x56xf32>
    %13 = vector.shape_cast %5 : vector<16x56xf32> to vector<2x8x56xf32>
    %14 = vector.shape_cast %12 : vector<2x56xf32> to vector<2x1x56xf32>
    %15 = vector.broadcast %14 : vector<2x1x56xf32> to vector<2x8x56xf32>
    %16 = arith.mulf %13, %15 : vector<2x8x56xf32>
    %17 = math.tanh %16 : vector<2x8x56xf32>
    %c0_11 = arith.constant 0 : index
    %c0_12 = arith.constant 0 : index
    %c0_13 = arith.constant 0 : index
    %18 = vector.load %arg5[%c0_11, %c0_12, %c0_13] : memref<2x8x56xf32, #tpu.memory_space<vmem>>, vector<2x8x56xf32>
    tpu.vector_store %arg5[%c0_11, %c0_12, %c0_13], %17 {strides = array<i32>} : memref<2x8x56xf32, #tpu.memory_space<vmem>>, vector<2x8x56xf32>,
    return
  }
  func.func @transform_0(%arg0: i32) -> (i32, i32) {
    %c0_i32 = arith.constant 0 : i32
    %c0_i32_0 = arith.constant 0 : i32
    return %arg0, %c0_i32 : i32, i32
  }
  func.func @transform_1(%arg0: i32) -> (i32, i32) {
    %c0_i32 = arith.constant 0 : i32
    %c0_i32_0 = arith.constant 0 : i32
    %c0_i32_1 = arith.constant 0 : i32
    return %c0_i32, %c0_i32_0 : i32, i32
  }
  func.func @transform_2(%arg0: i32) -> (i32, i32) {
    %c0_i32 = arith.constant 0 : i32
    %c0_i32_0 = arith.constant 0 : i32
    %c0_i32_1 = arith.constant 0 : i32
    return %c0_i32, %c0_i32_0 : i32, i32
  }
  func.func @transform_3(%arg0: i32) -> (i32, i32) {
    %c0_i32 = arith.constant 0 : i32
    %c0_i32_0 = arith.constant 0 : i32
    %c0_i32_1 = arith.constant 0 : i32
    return %c0_i32, %c0_i32_0 : i32, i32
  }
  func.func @transform_4(%arg0: i32) -> (i32, i32, i32) {
    %c0_i32 = arith.constant 0 : i32
    %c0_i32_0 = arith.constant 0 : i32
    %c0_i32_1 = arith.constant 0 : i32
    return %arg0, %c0_i32, %c0_i32_0 : i32, i32, i32
  }
}

</mosaic_0001>

<llo_original>
// kernel: tpu_custom_call.1
$region0: #{tpu_custom_call.1}
  #allocation0 [shape = 'u32[]', space=smem, size = 0x4, offset = 0x4, fixed_abs, tag = 'smem constant byte address 0x4 - core index']
  #allocation1 [shape = 'u32[144,128]{1,0:T(1,128)}', space=vmem, size = 0x12000, scoped, tag = 'internal scratch']
  %s0 = inlined_call_operand.hbm [shape: f32[16,16], index: 0, kind: input, shape index: {}]
  %s1 = inlined_call_operand.hbm [shape: f32[16,56], index: 1, kind: input, shape index: {}]
  %s2 = inlined_call_operand.hbm [shape: f32[16,56], index: 2, kind: input, shape index: {}]
  %s3 = inlined_call_operand.vmem [shape: f32[1,56], index: 3, kind: input, shape index: {}]
  %s4 = inlined_call_operand.hbm [shape: f32[2,8,56], index: 4, kind: output, shape index: {}]
  %s5 = sld [smem:[#allocation0]]
  $region38: #{tpu_custom_call.1} parent=0
    _
  %s7 = ssub.s32 1, %s5
  %s8 = scalar_select 0, %s7, %s5
  $region1: #{tpu_custom_call.1} parent=0
    #allocation2 [shape = 'u8[8192]{0}', space=vmem, size = 0x2000, scoped, tag = 'input window, operand 0, single buffered']
    #allocation3 [shape = 's32[1]{0}', space=sflag, size = 0x4, scoped, tag = 'scoped memory for tpu_custom_call.1']
    #allocation4 [shape = 's32[1]{0}', space=sflag, size = 0x4, scoped, tag = 'scoped memory for tpu_custom_call.1']
    #allocation5 [shape = 'u8[8192]{0}', space=vmem, size = 0x2000, scoped, tag = 'input window, operand 1, single buffered']
    #allocation6 [shape = 's32[1]{0}', space=sflag, size = 0x4, scoped, tag = 'scoped memory for tpu_custom_call.1']
    #allocation7 [shape = 'u8[8192]{0}', space=vmem, size = 0x2000, scoped, tag = 'input window, operand 2, single buffered']
    #allocation8 [shape = 'u8[8192]{0}', space=vmem, size = 0x2000, scoped, tag = 'output window, operand 0, single buffered']
    %9 = vsyncpa [#allocation3], 0
    %10 = vsyncpa [#allocation6], 0
    %11 = vsyncpa [#allocation4], 0
    // Predicated region
    $region2: #{tpu_custom_call.1} parent=1 // pred_check
      _
    $region3: #{tpu_custom_call.1} parent=1 // pred_check_branch
      %13 = sbr.rel (0) target = $region5
    $region4: #{tpu_custom_call.1} parent=1 // pred_region
      %s15 = ssub.s32 256, 256
      %16 = vsyncadd [#allocation3], %s15
      %s17 = sshll.u32 [#allocation2], 4
      %s18 = int_to_ptr.vmem [resolvable:$true] %s17
      %23 = dma.hbm_to_vmem [thread:$0]  %s0, 256, %s18, [#allocation3], 128, 128, 8
    $region5: #{tpu_custom_call.1} parent=1 // pred_fallthru
      _
    // Predicated region
    $region6: #{tpu_custom_call.1} parent=1 // pred_check
      _
    $region7: #{tpu_custom_call.1} parent=1 // pred_check_branch
      %25 = sbr.rel (0) target = $region9
    $region8: #{tpu_custom_call.1} parent=1 // pred_region
      %s27 = ssub.s32 256, 256
      %28 = vsyncadd [#allocation6], %s27
      %s29 = sshll.u32 [#allocation5], 4
      %s30 = int_to_ptr.vmem [resolvable:$true] %s29
      %35 = dma.hbm_to_vmem [thread:$0]  %s1, 256, %s30, [#allocation6], 128, 128, 8
    $region9: #{tpu_custom_call.1} parent=1 // pred_fallthru
      _
    // Predicated region
    $region10: #{tpu_custom_call.1} parent=1 // pred_check
      _
    $region11: #{tpu_custom_call.1} parent=1 // pred_check_branch
      %37 = sbr.rel (0) target = $region13
    $region12: #{tpu_custom_call.1} parent=1 // pred_region
      %s39 = ssub.s32 256, 256
      %40 = vsyncadd [#allocation6], %s39
      %s41 = sshll.u32 [#allocation7], 4
      %s42 = int_to_ptr.vmem [resolvable:$true] %s41
      %47 = dma.hbm_to_vmem [thread:$0]  %s2, 256, %s42, [#allocation6], 128, 128, 8
    $region13: #{tpu_custom_call.1} parent=1 // pred_fallthru
      _
    // Predicated region
    $region14: #{tpu_custom_call.1} parent=1 // pred_check
      _
    $region15: #{tpu_custom_call.1} parent=1 // pred_check_branch
      %49 = sbr.rel (0) target = $region17
    $region16: #{tpu_custom_call.1} parent=1 // pred_region
      _
    $region17: #{tpu_custom_call.1} parent=1 // pred_fallthru
      _
    // Predicated region
    $region18: #{tpu_custom_call.1} parent=1 // pred_check
      _
    $region19: #{tpu_custom_call.1} parent=1 // pred_check_branch
      %51 = sbr.rel (0) target = $region21
    $region20: #{tpu_custom_call.1} parent=1 // pred_region
      %52 = dma.done [#allocation3], 256
    $region21: #{tpu_custom_call.1} parent=1 // pred_fallthru
      _
    // Predicated region
    $region22: #{tpu_custom_call.1} parent=1 // pred_check
      _
    $region23: #{tpu_custom_call.1} parent=1 // pred_check_branch
      %54 = sbr.rel (0) target = $region25
    $region24: #{tpu_custom_call.1} parent=1 // pred_region
      %55 = dma.done [#allocation6], 256
    $region25: #{tpu_custom_call.1} parent=1 // pred_fallthru
      _
    // Predicated region
    $region26: #{tpu_custom_call.1} parent=1 // pred_check
      _
    $region27: #{tpu_custom_call.1} parent=1 // pred_check_branch
      %57 = sbr.rel (0) target = $region29
    $region28: #{tpu_custom_call.1} parent=1 // pred_region
      %58 = dma.done [#allocation6], 256
    $region29: #{tpu_custom_call.1} parent=1 // pred_fallthru
      _
    %v59 = vld [vmem:[#allocation2] sm:$0xff]
    %v60 = vld [vmem:[#allocation2 + $0x8] sm:$0xff]
    %v61 = vld [vmem:[#allocation5] sm:$0xff]
    %v62 = vld [vmem:[#allocation5 + $0x8] sm:$0xff]
    %v63 = vld [vmem:[%s3] sm:$0x1]
    %v65 = vlaneseq
    %v66 = vshrl.u32 %v65, 7
    %v67 = vsub.s32 0, %v66
    %v68 = vrot.slane %v63, %v67
    %vm70 = vcmask 130048
    %v72 = vsel %vm70, %v59, 0
    %v75 = vsel %vm70, %v60, 0
    %77 = vmatprep.subr.mxu0 0.0
    %v78 = vand.u32 %v61, 4294901760
    %79 = vmatpush1.msra.mxu0 %v78
    %80 = vmatprep.subr.mxu0 0.0
    %v81 = vand.u32 %v62, 4294901760
    %82 = vmatpush1.msra.mxu0 %v81
    %83 = vmatprep.subr.mxu0 0.0
    %84 = vmatpush1.msra.mxu0 0.0
    %85 = vmatprep.subr.mxu0 0.0
    %86 = vmatpush1.msra.mxu0 0.0
    %87 = vmatprep.subr.mxu0 0.0
    %88 = vmatpush1.msra.mxu0 0.0
    %89 = vmatprep.subr.mxu0 0.0
    %90 = vmatpush1.msra.mxu0 0.0
    %91 = vmatprep.subr.mxu0 0.0
    %92 = vmatpush1.msra.mxu0 0.0
    %93 = vmatprep.subr.mxu0 0.0
    %94 = vmatpush1.msra.mxu0 0.0
    %95 = vmatprep.subr.mxu0 0.0
    %96 = vmatpush1.msra.mxu0 0.0
    %97 = vmatprep.subr.mxu0 0.0
    %98 = vmatpush1.msra.mxu0 0.0
    %99 = vmatprep.subr.mxu0 0.0
    %100 = vmatpush1.msra.mxu0 0.0
    %101 = vmatprep.subr.mxu0 0.0
    %102 = vmatpush1.msra.mxu0 0.0
    %103 = vmatprep.subr.mxu0 0.0
    %104 = vmatpush1.msra.mxu0 0.0
    %105 = vmatprep.subr.mxu0 0.0
    %106 = vmatpush1.msra.mxu0 0.0
    %107 = vmatprep.subr.mxu0 0.0
    %108 = vmatpush1.msra.mxu0 0.0
    %109 = vmatprep.subr.mxu0 0.0
    %110 = vmatpush1.msra.mxu0 0.0
    %111 = vmatprep.subr.mxu0 0.0
    %112 = vmatpush1.msra.mxu0 0.0
    %113 = vmatprep.subr.mxu0 0.0
    %114 = vmatpush1.msra.mxu0 0.0
    %115 = vmatprep.subr.mxu0 0.0
    %116 = vmatpush1.msra.mxu0 0.0
    %117 = vmatprep.subr.mxu0 0.0
    %118 = vmatpush1.msra.mxu0 0.0
    %119 = vmatprep.subr.mxu0 0.0
    %120 = vmatpush1.msra.mxu0 0.0
    %121 = vmatprep.subr.mxu0 0.0
    %122 = vmatpush1.msra.mxu0 0.0
    %123 = vmatprep.subr.mxu0 0.0
    %124 = vmatpush1.msra.mxu0 0.0
    %125 = vmatprep.subr.mxu0 0.0
    %126 = vmatpush1.msra.mxu0 0.0
    %127 = vmatprep.subr.mxu0 0.0
    %128 = vmatpush1.msra.mxu0 0.0
    %129 = vmatprep.subr.mxu0 0.0
    %130 = vmatpush1.msra.mxu0 0.0
    %131 = vmatprep.subr.mxu0 0.0
    %132 = vmatpush1.msra.mxu0 0.0
    %133 = vmatprep.subr.mxu0 0.0
    %134 = vmatpush1.msra.mxu0 0.0
    %135 = vmatprep.subr.mxu0 0.0
    %136 = vmatpush1.msra.mxu0 0.0
    %137 = vmatprep.subr.mxu0 0.0
    %138 = vmatpush1.msra.mxu0 0.0
    %139 = vmatprep.subr.mxu0 0.0
    %140 = vmatpush1.msra.mxu0 0.0
    %141 = vmatprep.subr.mxu0 0.0
    %142 = vmatpush1.msra.mxu0 0.0
    %143 = vmatprep.mubr.f32.mxu0 0.0
    %v144 = vand.u32 %v72, 4294901760
    %v145 = vsub.f32 %v72, %v144
    %v146 = vand.u32 %v145, 4294901760
    %v147 = vsub.f32 %v145, %v146
    %v148 = vand.u32 %v147, 4294901760
    %149 = vmatmul.mubr.f32.gmra.mrb[0].mxu0 %v148
    %v150 = vpop.f32.mrb[0].mxu0
    %v151 = vadd.f32 %v68, %v150
    %v152 = vpop.f32.mrb[0].mxu0
    %153 = vmatprep.mubr.f32.mxu0 0.0
    %v154 = vand.u32 %v75, 4294901760
    %v155 = vsub.f32 %v75, %v154
    %v156 = vand.u32 %v155, 4294901760
    %v157 = vsub.f32 %v155, %v156
    %v158 = vand.u32 %v157, 4294901760
    %159 = vmatmul.mubr.f32.gmra.mrb[0].mxu0 %v158
    %v160 = vpop.f32.mrb[0].mxu0
    %v161 = vadd.f32 %v68, %v160
    %v162 = vpop.f32.mrb[0].mxu0
    %163 = vdwg.mxu0
    %164 = vmatprep.subr.mxu0 0.0
    %v165 = vand.u32 %v61, 4294901760
    %v166 = vsub.f32 %v61, %v165
    %v167 = vand.u32 %v166, 4294901760
    %v168 = vsub.f32 %v166, %v167
    %v169 = vand.u32 %v168, 4294901760
    %170 = vmatpush1.msra.mxu0 %v169
    %171 = vmatprep.subr.mxu0 0.0
    %v172 = vand.u32 %v62, 4294901760
    %v173 = vsub.f32 %v62, %v172
    %v174 = vand.u32 %v173, 4294901760
    %v175 = vsub.f32 %v173, %v174
    %v176 = vand.u32 %v175, 4294901760
    %177 = vmatpush1.msra.mxu0 %v176
    %178 = vmatprep.subr.mxu0 0.0
    %179 = vmatpush1.msra.mxu0 0.0
    %180 = vmatprep.subr.mxu0 0.0
    %181 = vmatpush1.msra.mxu0 0.0
    %182 = vmatprep.subr.mxu0 0.0
    %183 = vmatpush1.msra.mxu0 0.0
    %184 = vmatprep.subr.mxu0 0.0
    %185 = vmatpush1.msra.mxu0 0.0
    %186 = vmatprep.subr.mxu0 0.0
    %187 = vmatpush1.msra.mxu0 0.0
    %188 = vmatprep.subr.mxu0 0.0
    %189 = vmatpush1.msra.mxu0 0.0
    %190 = vmatprep.subr.mxu0 0.0
    %191 = vmatpush1.msra.mxu0 0.0
    %192 = vmatprep.subr.mxu0 0.0
    %193 = vmatpush1.msra.mxu0 0.0
    %194 = vmatprep.subr.mxu0 0.0
    %195 = vmatpush1.msra.mxu0 0.0
    %196 = vmatprep.subr.mxu0 0.0
    %197 = vmatpush1.msra.mxu0 0.0
    %198 = vmatprep.subr.mxu0 0.0
    %199 = vmatpush1.msra.mxu0 0.0
    %200 = vmatprep.subr.mxu0 0.0
    %201 = vmatpush1.msra.mxu0 0.0
    %202 = vmatprep.subr.mxu0 0.0
    %203 = vmatpush1.msra.mxu0 0.0
    %204 = vmatprep.subr.mxu0 0.0
    %205 = vmatpush1.msra.mxu0 0.0
    %206 = vmatprep.subr.mxu0 0.0
    %207 = vmatpush1.msra.mxu0 0.0
    %208 = vmatprep.subr.mxu0 0.0
    %209 = vmatpush1.msra.mxu0 0.0
    %210 = vmatprep.subr.mxu0 0.0
    %211 = vmatpush1.msra.mxu0 0.0
    %212 = vmatprep.subr.mxu0 0.0
    %213 = vmatpush1.msra.mxu0 0.0
    %214 = vmatprep.subr.mxu0 0.0
    %215 = vmatpush1.msra.mxu0 0.0
    %216 = vmatprep.subr.mxu0 0.0
    %217 = vmatpush1.msra.mxu0 0.0
    %218 = vmatprep.subr.mxu0 0.0
    %219 = vmatpush1.msra.mxu0 0.0
    %220 = vmatprep.subr.mxu0 0.0
    %221 = vmatpush1.msra.mxu0 0.0
    %222 = vmatprep.subr.mxu0 0.0
    %223 = vmatpush1.msra.mxu0 0.0
    %224 = vmatprep.subr.mxu0 0.0
    %225 = vmatpush1.msra.mxu0 0.0
    %226 = vmatprep.subr.mxu0 0.0
    %227 = vmatpush1.msra.mxu0 0.0
    %228 = vmatprep.subr.mxu0 0.0
    %229 = vmatpush1.msra.mxu0 0.0
    %230 = vmatprep.subr.mxu0 0.0
    %231 = vmatpush1.msra.mxu0 0.0
    %232 = vmatprep.subr.mxu0 0.0
    %233 = vmatpush1.msra.mxu0 0.0
    %234 = vmatprep.subr.mxu0 0.0
    %235 = vmatpush1.msra.mxu0 0.0
    %236 = vmatprep.subr.mxu0 0.0
    %237 = vmatpush1.msra.mxu0 0.0
    %238 = vmatprep.mubr.f32.mxu0 0.0
    %v239 = vand.u32 %v72, 4294901760
    %240 = vmatmul.mubr.f32.gmra.mrb[0].mxu0 %v239
    %v241 = vpop.f32.mrb[0].mxu0
    %v242 = vadd.f32 %v151, %v241
    %v243 = vpop.f32.mrb[0].mxu0
    %244 = vmatprep.mubr.f32.mxu0 0.0
    %v245 = vand.u32 %v75, 4294901760
    %246 = vmatmul.mubr.f32.gmra.mrb[0].mxu0 %v245
    %v247 = vpop.f32.mrb[0].mxu0
    %v248 = vadd.f32 %v161, %v247
    %v249 = vpop.f32.mrb[0].mxu0
    %250 = vdwg.mxu0
    %251 = vmatprep.subr.mxu0 0.0
    %v252 = vand.u32 %v61, 4294901760
    %v253 = vsub.f32 %v61, %v252
    %254 = vmatpush1.msra.mxu0 %v253
    %255 = vmatprep.subr.mxu0 0.0
    %v256 = vand.u32 %v62, 4294901760
    %v257 = vsub.f32 %v62, %v256
    %258 = vmatpush1.msra.mxu0 %v257
    %259 = vmatprep.subr.mxu0 0.0
    %260 = vmatpush1.msra.mxu0 0.0
    %261 = vmatprep.subr.mxu0 0.0
    %262 = vmatpush1.msra.mxu0 0.0
    %263 = vmatprep.subr.mxu0 0.0
    %264 = vmatpush1.msra.mxu0 0.0
    %265 = vmatprep.subr.mxu0 0.0
    %266 = vmatpush1.msra.mxu0 0.0
    %267 = vmatprep.subr.mxu0 0.0
    %268 = vmatpush1.msra.mxu0 0.0
    %269 = vmatprep.subr.mxu0 0.0
    %270 = vmatpush1.msra.mxu0 0.0
    %271 = vmatprep.subr.mxu0 0.0
    %272 = vmatpush1.msra.mxu0 0.0
    %273 = vmatprep.subr.mxu0 0.0
    %274 = vmatpush1.msra.mxu0 0.0
    %275 = vmatprep.subr.mxu0 0.0
    %276 = vmatpush1.msra.mxu0 0.0
    %277 = vmatprep.subr.mxu0 0.0
    %278 = vmatpush1.msra.mxu0 0.0
    %279 = vmatprep.subr.mxu0 0.0
    %280 = vmatpush1.msra.mxu0 0.0
    %281 = vmatprep.subr.mxu0 0.0
    %282 = vmatpush1.msra.mxu0 0.0
    %283 = vmatprep.subr.mxu0 0.0
    %284 = vmatpush1.msra.mxu0 0.0
    %285 = vmatprep.subr.mxu0 0.0
    %286 = vmatpush1.msra.mxu0 0.0
    %287 = vmatprep.subr.mxu0 0.0
    %288 = vmatpush1.msra.mxu0 0.0
    %289 = vmatprep.subr.mxu0 0.0
    %290 = vmatpush1.msra.mxu0 0.0
    %291 = vmatprep.subr.mxu0 0.0
    %292 = vmatpush1.msra.mxu0 0.0
    %293 = vmatprep.subr.mxu0 0.0
    %294 = vmatpush1.msra.mxu0 0.0
    %295 = vmatprep.subr.mxu0 0.0
    %296 = vmatpush1.msra.mxu0 0.0
    %297 = vmatprep.subr.mxu0 0.0
    %298 = vmatpush1.msra.mxu0 0.0
    %299 = vmatprep.subr.mxu0 0.0
    %300 = vmatpush1.msra.mxu0 0.0
    %301 = vmatprep.subr.mxu0 0.0
    %302 = vmatpush1.msra.mxu0 0.0
    %303 = vmatprep.subr.mxu0 0.0
    %304 = vmatpush1.msra.mxu0 0.0
    %305 = vmatprep.subr.mxu0 0.0
    %306 = vmatpush1.msra.mxu0 0.0
    %307 = vmatprep.subr.mxu0 0.0
    %308 = vmatpush1.msra.mxu0 0.0
    %309 = vmatprep.subr.mxu0 0.0
    %310 = vmatpush1.msra.mxu0 0.0
    %311 = vmatprep.subr.mxu0 0.0
    %312 = vmatpush1.msra.mxu0 0.0
    %313 = vmatprep.subr.mxu0 0.0
    %314 = vmatpush1.msra.mxu0 0.0
    %315 = vmatprep.subr.mxu0 0.0
    %316 = vmatpush1.msra.mxu0 0.0
    %317 = vmatprep.subr.mxu0 0.0
    %318 = vmatpush1.msra.mxu0 0.0
    %319 = vmatprep.mubr.f32.mxu0 0.0
    %v320 = vand.u32 %v72, 4294901760
    %v321 = vsub.f32 %v72, %v320
    %322 = vmatmul.mubr.f32.gmra.mrb[0].mxu0 %v321
    %v323 = vpop.f32.mrb[0].mxu0
    %v324 = vadd.f32 %v242, %v323
    %v325 = vpop.f32.mrb[0].mxu0
    %326 = vmatprep.mubr.f32.mxu0 0.0
    %v327 = vand.u32 %v75, 4294901760
    %v328 = vsub.f32 %v75, %v327
    %329 = vmatmul.mubr.f32.gmra.mrb[0].mxu0 %v328
    %v330 = vpop.f32.mrb[0].mxu0
    %v331 = vadd.f32 %v248, %v330
    %v332 = vpop.f32.mrb[0].mxu0
    %333 = vdwg.mxu0
    %334 = vmatprep.subr.mxu0 0.0
    %v335 = vand.u32 %v61, 4294901760
    %336 = vmatpush1.msra.mxu0 %v335
    %337 = vmatprep.subr.mxu0 0.0
    %v338 = vand.u32 %v62, 4294901760
    %339 = vmatpush1.msra.mxu0 %v338
    %340 = vmatprep.subr.mxu0 0.0
    %341 = vmatpush1.msra.mxu0 0.0
    %342 = vmatprep.subr.mxu0 0.0
    %343 = vmatpush1.msra.mxu0 0.0
    %344 = vmatprep.subr.mxu0 0.0
    %345 = vmatpush1.msra.mxu0 0.0
    %346 = vmatprep.subr.mxu0 0.0
    %347 = vmatpush1.msra.mxu0 0.0
    %348 = vmatprep.subr.mxu0 0.0
    %349 = vmatpush1.msra.mxu0 0.0
    %350 = vmatprep.subr.mxu0 0.0
    %351 = vmatpush1.msra.mxu0 0.0
    %352 = vmatprep.subr.mxu0 0.0
    %353 = vmatpush1.msra.mxu0 0.0
    %354 = vmatprep.subr.mxu0 0.0
    %355 = vmatpush1.msra.mxu0 0.0
    %356 = vmatprep.subr.mxu0 0.0
    %357 = vmatpush1.msra.mxu0 0.0
    %358 = vmatprep.subr.mxu0 0.0
    %359 = vmatpush1.msra.mxu0 0.0
    %360 = vmatprep.subr.mxu0 0.0
    %361 = vmatpush1.msra.mxu0 0.0
    %362 = vmatprep.subr.mxu0 0.0
    %363 = vmatpush1.msra.mxu0 0.0
    %364 = vmatprep.subr.mxu0 0.0
    %365 = vmatpush1.msra.mxu0 0.0
    %366 = vmatprep.subr.mxu0 0.0
    %367 = vmatpush1.msra.mxu0 0.0
    %368 = vmatprep.subr.mxu0 0.0
    %369 = vmatpush1.msra.mxu0 0.0
    %370 = vmatprep.subr.mxu0 0.0
    %371 = vmatpush1.msra.mxu0 0.0
    %372 = vmatprep.subr.mxu0 0.0
    %373 = vmatpush1.msra.mxu0 0.0
    %374 = vmatprep.subr.mxu0 0.0
    %375 = vmatpush1.msra.mxu0 0.0
    %376 = vmatprep.subr.mxu0 0.0
    %377 = vmatpush1.msra.mxu0 0.0
    %378 = vmatprep.subr.mxu0 0.0
    %379 = vmatpush1.msra.mxu0 0.0
    %380 = vmatprep.subr.mxu0 0.0
    %381 = vmatpush1.msra.mxu0 0.0
    %382 = vmatprep.subr.mxu0 0.0
    %383 = vmatpush1.msra.mxu0 0.0
    %384 = vmatprep.subr.mxu0 0.0
    %385 = vmatpush1.msra.mxu0 0.0
    %386 = vmatprep.subr.mxu0 0.0
    %387 = vmatpush1.msra.mxu0 0.0
    %388 = vmatprep.subr.mxu0 0.0
    %389 = vmatpush1.msra.mxu0 0.0
    %390 = vmatprep.subr.mxu0 0.0
    %391 = vmatpush1.msra.mxu0 0.0
    %392 = vmatprep.subr.mxu0 0.0
    %393 = vmatpush1.msra.mxu0 0.0
    %394 = vmatprep.subr.mxu0 0.0
    %395 = vmatpush1.msra.mxu0 0.0
    %396 = vmatprep.subr.mxu0 0.0
    %397 = vmatpush1.msra.mxu0 0.0
    %398 = vmatprep.subr.mxu0 0.0
    %399 = vmatpush1.msra.mxu0 0.0
    %400 = vmatprep.mubr.f32.mxu0 0.0
    %v401 = vand.u32 %v72, 4294901760
    %v402 = vsub.f32 %v72, %v401
    %v403 = vand.u32 %v402, 4294901760
    %404 = vmatmul.mubr.f32.gmra.mrb[0].mxu0 %v403
    %v405 = vpop.f32.mrb[0].mxu0
    %v406 = vadd.f32 %v324, %v405
    %v407 = vpop.f32.mrb[0].mxu0
    %408 = vmatprep.mubr.f32.mxu0 0.0
    %v409 = vand.u32 %v75, 4294901760
    %v410 = vsub.f32 %v75, %v409
    %v411 = vand.u32 %v410, 4294901760
    %412 = vmatmul.mubr.f32.gmra.mrb[0].mxu0 %v411
    %v413 = vpop.f32.mrb[0].mxu0
    %v414 = vadd.f32 %v331, %v413
    %v415 = vpop.f32.mrb[0].mxu0
    %416 = vdwg.mxu0
    %417 = vmatprep.subr.mxu0 0.0
    %v418 = vand.u32 %v61, 4294901760
    %v419 = vsub.f32 %v61, %v418
    %v420 = vand.u32 %v419, 4294901760
    %421 = vmatpush1.msra.mxu0 %v420
    %422 = vmatprep.subr.mxu0 0.0
    %v423 = vand.u32 %v62, 4294901760
    %v424 = vsub.f32 %v62, %v423
    %v425 = vand.u32 %v424, 4294901760
    %426 = vmatpush1.msra.mxu0 %v425
    %427 = vmatprep.subr.mxu0 0.0
    %428 = vmatpush1.msra.mxu0 0.0
    %429 = vmatprep.subr.mxu0 0.0
    %430 = vmatpush1.msra.mxu0 0.0
    %431 = vmatprep.subr.mxu0 0.0
    %432 = vmatpush1.msra.mxu0 0.0
    %433 = vmatprep.subr.mxu0 0.0
    %434 = vmatpush1.msra.mxu0 0.0
    %435 = vmatprep.subr.mxu0 0.0
    %436 = vmatpush1.msra.mxu0 0.0
    %437 = vmatprep.subr.mxu0 0.0
    %438 = vmatpush1.msra.mxu0 0.0
    %439 = vmatprep.subr.mxu0 0.0
    %440 = vmatpush1.msra.mxu0 0.0
    %441 = vmatprep.subr.mxu0 0.0
    %442 = vmatpush1.msra.mxu0 0.0
    %443 = vmatprep.subr.mxu0 0.0
    %444 = vmatpush1.msra.mxu0 0.0
    %445 = vmatprep.subr.mxu0 0.0
    %446 = vmatpush1.msra.mxu0 0.0
    %447 = vmatprep.subr.mxu0 0.0
    %448 = vmatpush1.msra.mxu0 0.0
    %449 = vmatprep.subr.mxu0 0.0
    %450 = vmatpush1.msra.mxu0 0.0
    %451 = vmatprep.subr.mxu0 0.0
    %452 = vmatpush1.msra.mxu0 0.0
    %453 = vmatprep.subr.mxu0 0.0
    %454 = vmatpush1.msra.mxu0 0.0
    %455 = vmatprep.subr.mxu0 0.0
    %456 = vmatpush1.msra.mxu0 0.0
    %457 = vmatprep.subr.mxu0 0.0
    %458 = vmatpush1.msra.mxu0 0.0
    %459 = vmatprep.subr.mxu0 0.0
    %460 = vmatpush1.msra.mxu0 0.0
    %461 = vmatprep.subr.mxu0 0.0
    %462 = vmatpush1.msra.mxu0 0.0
    %463 = vmatprep.subr.mxu0 0.0
    %464 = vmatpush1.msra.mxu0 0.0
    %465 = vmatprep.subr.mxu0 0.0
    %466 = vmatpush1.msra.mxu0 0.0
    %467 = vmatprep.subr.mxu0 0.0
    %468 = vmatpush1.msra.mxu0 0.0
    %469 = vmatprep.subr.mxu0 0.0
    %470 = vmatpush1.msra.mxu0 0.0
    %471 = vmatprep.subr.mxu0 0.0
    %472 = vmatpush1.msra.mxu0 0.0
    %473 = vmatprep.subr.mxu0 0.0
    %474 = vmatpush1.msra.mxu0 0.0
    %475 = vmatprep.subr.mxu0 0.0
    %476 = vmatpush1.msra.mxu0 0.0
    %477 = vmatprep.subr.mxu0 0.0
    %478 = vmatpush1.msra.mxu0 0.0
    %479 = vmatprep.subr.mxu0 0.0
    %480 = vmatpush1.msra.mxu0 0.0
    %481 = vmatprep.subr.mxu0 0.0
    %482 = vmatpush1.msra.mxu0 0.0
    %483 = vmatprep.subr.mxu0 0.0
    %484 = vmatpush1.msra.mxu0 0.0
    %485 = vmatprep.subr.mxu0 0.0
    %486 = vmatpush1.msra.mxu0 0.0
    %487 = vmatprep.mubr.f32.mxu0 0.0
    %v488 = vand.u32 %v72, 4294901760
    %489 = vmatmul.mubr.f32.gmra.mrb[0].mxu0 %v488
    %v490 = vpop.f32.mrb[0].mxu0
    %v491 = vadd.f32 %v406, %v490
    %v492 = vpop.f32.mrb[0].mxu0
    %493 = vmatprep.mubr.f32.mxu0 0.0
    %v494 = vand.u32 %v75, 4294901760
    %495 = vmatmul.mubr.f32.gmra.mrb[0].mxu0 %v494
    %v496 = vpop.f32.mrb[0].mxu0
    %v497 = vadd.f32 %v414, %v496
    %v498 = vpop.f32.mrb[0].mxu0
    %499 = vdwg.mxu0
    %500 = vmatprep.subr.mxu0 0.0
    %v501 = vand.u32 %v61, 4294901760
    %502 = vmatpush1.msra.mxu0 %v501
    %503 = vmatprep.subr.mxu0 0.0
    %v504 = vand.u32 %v62, 4294901760
    %505 = vmatpush1.msra.mxu0 %v504
    %506 = vmatprep.subr.mxu0 0.0
    %507 = vmatpush1.msra.mxu0 0.0
    %508 = vmatprep.subr.mxu0 0.0
    %509 = vmatpush1.msra.mxu0 0.0
    %510 = vmatprep.subr.mxu0 0.0
    %511 = vmatpush1.msra.mxu0 0.0
    %512 = vmatprep.subr.mxu0 0.0
    %513 = vmatpush1.msra.mxu0 0.0
    %514 = vmatprep.subr.mxu0 0.0
    %515 = vmatpush1.msra.mxu0 0.0
    %516 = vmatprep.subr.mxu0 0.0
    %517 = vmatpush1.msra.mxu0 0.0
    %518 = vmatprep.subr.mxu0 0.0
    %519 = vmatpush1.msra.mxu0 0.0
    %520 = vmatprep.subr.mxu0 0.0
    %521 = vmatpush1.msra.mxu0 0.0
    %522 = vmatprep.subr.mxu0 0.0
    %523 = vmatpush1.msra.mxu0 0.0
    %524 = vmatprep.subr.mxu0 0.0
    %525 = vmatpush1.msra.mxu0 0.0
    %526 = vmatprep.subr.mxu0 0.0
    %527 = vmatpush1.msra.mxu0 0.0
    %528 = vmatprep.subr.mxu0 0.0
    %529 = vmatpush1.msra.mxu0 0.0
    %530 = vmatprep.subr.mxu0 0.0
    %531 = vmatpush1.msra.mxu0 0.0
    %532 = vmatprep.subr.mxu0 0.0
    %533 = vmatpush1.msra.mxu0 0.0
    %534 = vmatprep.subr.mxu0 0.0
    %535 = vmatpush1.msra.mxu0 0.0
    %536 = vmatprep.subr.mxu0 0.0
    %537 = vmatpush1.msra.mxu0 0.0
    %538 = vmatprep.subr.mxu0 0.0
    %539 = vmatpush1.msra.mxu0 0.0
    %540 = vmatprep.subr.mxu0 0.0
    %541 = vmatpush1.msra.mxu0 0.0
    %542 = vmatprep.subr.mxu0 0.0
    %543 = vmatpush1.msra.mxu0 0.0
    %544 = vmatprep.subr.mxu0 0.0
    %545 = vmatpush1.msra.mxu0 0.0
    %546 = vmatprep.subr.mxu0 0.0
    %547 = vmatpush1.msra.mxu0 0.0
    %548 = vmatprep.subr.mxu0 0.0
    %549 = vmatpush1.msra.mxu0 0.0
    %550 = vmatprep.subr.mxu0 0.0
    %551 = vmatpush1.msra.mxu0 0.0
    %552 = vmatprep.subr.mxu0 0.0
    %553 = vmatpush1.msra.mxu0 0.0
    %554 = vmatprep.subr.mxu0 0.0
    %555 = vmatpush1.msra.mxu0 0.0
    %556 = vmatprep.subr.mxu0 0.0
    %557 = vmatpush1.msra.mxu0 0.0
    %558 = vmatprep.subr.mxu0 0.0
    %559 = vmatpush1.msra.mxu0 0.0
    %560 = vmatprep.subr.mxu0 0.0
    %561 = vmatpush1.msra.mxu0 0.0
    %562 = vmatprep.subr.mxu0 0.0
    %563 = vmatpush1.msra.mxu0 0.0
    %564 = vmatprep.subr.mxu0 0.0
    %565 = vmatpush1.msra.mxu0 0.0
    %566 = vmatprep.mubr.f32.mxu0 0.0
    %v567 = vand.u32 %v72, 4294901760
    %568 = vmatmul.mubr.f32.gmra.mrb[0].mxu0 %v567
    %v569 = vpop.f32.mrb[0].mxu0
    %v570 = vadd.f32 %v491, %v569
    %v571 = vpop.f32.mrb[0].mxu0
    %572 = vmatprep.mubr.f32.mxu0 0.0
    %v573 = vand.u32 %v75, 4294901760
    %574 = vmatmul.mubr.f32.gmra.mrb[0].mxu0 %v573
    %v575 = vpop.f32.mrb[0].mxu0
    %v576 = vadd.f32 %v497, %v575
    %v577 = vpop.f32.mrb[0].mxu0
    %578 = vdwg.mxu0
    %v579 = vsel %vm70, %v59, 0.0
    %v580 = vrot.slane %v579, 4
    %v581 = vadd.f32 %v579, %v580
    %v582 = vrot.slane %v581, 2
    %v583 = vadd.f32 %v581, %v582
    %v584 = vrot.slane %v583, 1
    %v585 = vadd.f32 %v583, %v584
    %v586 = vsel %vm70, %v60, 0.0
    %v587 = vrot.slane %v586, 4
    %v588 = vadd.f32 %v586, %v587
    %v589 = vrot.slane %v588, 2
    %v590 = vadd.f32 %v588, %v589
    %v591 = vrot.slane %v590, 1
    %v592 = vadd.f32 %v590, %v591
    %v593 = vld [vmem:[#allocation7] sm:$0xff]
    %v594 = vld [vmem:[#allocation7 + $0x8] sm:$0xff]
    %vm597 = vcmask 1041409
    %v598 = vsel %vm597, %v592, %v585
    %v599 = vsel %vm70, %v598, 0
    %601 = vmatprep.subr.mxu0 0.0
    %v602 = vand.u32 %v593, 4294901760
    %603 = vmatpush1.msra.mxu0 %v602
    %604 = vmatprep.subr.mxu0 0.0
    %v605 = vand.u32 %v594, 4294901760
    %606 = vmatpush1.msra.mxu0 %v605
    %607 = vmatprep.subr.mxu0 0.0
    %608 = vmatpush1.msra.mxu0 0.0
    %609 = vmatprep.subr.mxu0 0.0
    %610 = vmatpush1.msra.mxu0 0.0
    %611 = vmatprep.subr.mxu0 0.0
    %612 = vmatpush1.msra.mxu0 0.0
    %613 = vmatprep.subr.mxu0 0.0
    %614 = vmatpush1.msra.mxu0 0.0
    %615 = vmatprep.subr.mxu0 0.0
    %616 = vmatpush1.msra.mxu0 0.0
    %617 = vmatprep.subr.mxu0 0.0
    %618 = vmatpush1.msra.mxu0 0.0
    %619 = vmatprep.subr.mxu0 0.0
    %620 = vmatpush1.msra.mxu0 0.0
    %621 = vmatprep.subr.mxu0 0.0
    %622 = vmatpush1.msra.mxu0 0.0
    %623 = vmatprep.subr.mxu0 0.0
    %624 = vmatpush1.msra.mxu0 0.0
    %625 = vmatprep.subr.mxu0 0.0
    %626 = vmatpush1.msra.mxu0 0.0
    %627 = vmatprep.subr.mxu0 0.0
    %628 = vmatpush1.msra.mxu0 0.0
    %629 = vmatprep.subr.mxu0 0.0
    %630 = vmatpush1.msra.mxu0 0.0
    %631 = vmatprep.subr.mxu0 0.0
    %632 = vmatpush1.msra.mxu0 0.0
    %633 = vmatprep.subr.mxu0 0.0
    %634 = vmatpush1.msra.mxu0 0.0
    %635 = vmatprep.subr.mxu0 0.0
    %636 = vmatpush1.msra.mxu0 0.0
    %637 = vmatprep.subr.mxu0 0.0
    %638 = vmatpush1.msra.mxu0 0.0
    %639 = vmatprep.subr.mxu0 0.0
    %640 = vmatpush1.msra.mxu0 0.0
    %641 = vmatprep.subr.mxu0 0.0
    %642 = vmatpush1.msra.mxu0 0.0
    %643 = vmatprep.subr.mxu0 0.0
    %644 = vmatpush1.msra.mxu0 0.0
    %645 = vmatprep.subr.mxu0 0.0
    %646 = vmatpush1.msra.mxu0 0.0
    %647 = vmatprep.subr.mxu0 0.0
    %648 = vmatpush1.msra.mxu0 0.0
    %649 = vmatprep.subr.mxu0 0.0
    %650 = vmatpush1.msra.mxu0 0.0
    %651 = vmatprep.subr.mxu0 0.0
    %652 = vmatpush1.msra.mxu0 0.0
    %653 = vmatprep.subr.mxu0 0.0
    %654 = vmatpush1.msra.mxu0 0.0
    %655 = vmatprep.subr.mxu0 0.0
    %656 = vmatpush1.msra.mxu0 0.0
    %657 = vmatprep.subr.mxu0 0.0
    %658 = vmatpush1.msra.mxu0 0.0
    %659 = vmatprep.subr.mxu0 0.0
    %660 = vmatpush1.msra.mxu0 0.0
    %661 = vmatprep.subr.mxu0 0.0
    %662 = vmatpush1.msra.mxu0 0.0
    %663 = vmatprep.subr.mxu0 0.0
    %664 = vmatpush1.msra.mxu0 0.0
    %665 = vmatprep.subr.mxu0 0.0
    %666 = vmatpush1.msra.mxu0 0.0
    %667 = vmatprep.mubr.f32.mxu0 0.0
    %v668 = vand.u32 %v599, 4294901760
    %v669 = vsub.f32 %v599, %v668
    %v670 = vand.u32 %v669, 4294901760
    %v671 = vsub.f32 %v669, %v670
    %v672 = vand.u32 %v671, 4294901760
    %673 = vmatmul.mubr.f32.gmra.mrb[0].mxu0 %v672
    %v674 = vpop.f32.mrb[0].mxu0
    %v675 = vadd.f32 %v68, %v674
    %v676 = vpop.f32.mrb[0].mxu0
    %677 = vdwg.mxu0
    %678 = vmatprep.subr.mxu0 0.0
    %v679 = vand.u32 %v593, 4294901760
    %v680 = vsub.f32 %v593, %v679
    %v681 = vand.u32 %v680, 4294901760
    %v682 = vsub.f32 %v680, %v681
    %v683 = vand.u32 %v682, 4294901760
    %684 = vmatpush1.msra.mxu0 %v683
    %685 = vmatprep.subr.mxu0 0.0
    %v686 = vand.u32 %v594, 4294901760
    %v687 = vsub.f32 %v594, %v686
    %v688 = vand.u32 %v687, 4294901760
    %v689 = vsub.f32 %v687, %v688
    %v690 = vand.u32 %v689, 4294901760
    %691 = vmatpush1.msra.mxu0 %v690
    %692 = vmatprep.subr.mxu0 0.0
    %693 = vmatpush1.msra.mxu0 0.0
    %694 = vmatprep.subr.mxu0 0.0
    %695 = vmatpush1.msra.mxu0 0.0
    %696 = vmatprep.subr.mxu0 0.0
    %697 = vmatpush1.msra.mxu0 0.0
    %698 = vmatprep.subr.mxu0 0.0
    %699 = vmatpush1.msra.mxu0 0.0
    %700 = vmatprep.subr.mxu0 0.0
    %701 = vmatpush1.msra.mxu0 0.0
    %702 = vmatprep.subr.mxu0 0.0
    %703 = vmatpush1.msra.mxu0 0.0
    %704 = vmatprep.subr.mxu0 0.0
    %705 = vmatpush1.msra.mxu0 0.0
    %706 = vmatprep.subr.mxu0 0.0
    %707 = vmatpush1.msra.mxu0 0.0
    %708 = vmatprep.subr.mxu0 0.0
    %709 = vmatpush1.msra.mxu0 0.0
    %710 = vmatprep.subr.mxu0 0.0
    %711 = vmatpush1.msra.mxu0 0.0
    %712 = vmatprep.subr.mxu0 0.0
    %713 = vmatpush1.msra.mxu0 0.0
    %714 = vmatprep.subr.mxu0 0.0
    %715 = vmatpush1.msra.mxu0 0.0
    %716 = vmatprep.subr.mxu0 0.0
    %717 = vmatpush1.msra.mxu0 0.0
    %718 = vmatprep.subr.mxu0 0.0
    %719 = vmatpush1.msra.mxu0 0.0
    %720 = vmatprep.subr.mxu0 0.0
    %721 = vmatpush1.msra.mxu0 0.0
    %722 = vmatprep.subr.mxu0 0.0
    %723 = vmatpush1.msra.mxu0 0.0
    %724 = vmatprep.subr.mxu0 0.0
    %725 = vmatpush1.msra.mxu0 0.0
    %726 = vmatprep.subr.mxu0 0.0
    %727 = vmatpush1.msra.mxu0 0.0
    %728 = vmatprep.subr.mxu0 0.0
    %729 = vmatpush1.msra.mxu0 0.0
    %730 = vmatprep.subr.mxu0 0.0
    %731 = vmatpush1.msra.mxu0 0.0
    %732 = vmatprep.subr.mxu0 0.0
    %733 = vmatpush1.msra.mxu0 0.0
    %734 = vmatprep.subr.mxu0 0.0
    %735 = vmatpush1.msra.mxu0 0.0
    %736 = vmatprep.subr.mxu0 0.0
    %737 = vmatpush1.msra.mxu0 0.0
    %738 = vmatprep.subr.mxu0 0.0
    %739 = vmatpush1.msra.mxu0 0.0
    %740 = vmatprep.subr.mxu0 0.0
    %741 = vmatpush1.msra.mxu0 0.0
    %742 = vmatprep.subr.mxu0 0.0
    %743 = vmatpush1.msra.mxu0 0.0
    %744 = vmatprep.subr.mxu0 0.0
    %745 = vmatpush1.msra.mxu0 0.0
    %746 = vmatprep.subr.mxu0 0.0
    %747 = vmatpush1.msra.mxu0 0.0
    %748 = vmatprep.subr.mxu0 0.0
    %749 = vmatpush1.msra.mxu0 0.0
    %750 = vmatprep.subr.mxu0 0.0
    %751 = vmatpush1.msra.mxu0 0.0
    %752 = vmatprep.mubr.f32.mxu0 0.0
    %v753 = vand.u32 %v599, 4294901760
    %754 = vmatmul.mubr.f32.gmra.mrb[0].mxu0 %v753
    %v755 = vpop.f32.mrb[0].mxu0
    %v756 = vadd.f32 %v675, %v755
    %v757 = vpop.f32.mrb[0].mxu0
    %758 = vdwg.mxu0
    %759 = vmatprep.subr.mxu0 0.0
    %v760 = vand.u32 %v593, 4294901760
    %v761 = vsub.f32 %v593, %v760
    %762 = vmatpush1.msra.mxu0 %v761
    %763 = vmatprep.subr.mxu0 0.0
    %v764 = vand.u32 %v594, 4294901760
    %v765 = vsub.f32 %v594, %v764
    %766 = vmatpush1.msra.mxu0 %v765
    %767 = vmatprep.subr.mxu0 0.0
    %768 = vmatpush1.msra.mxu0 0.0
    %769 = vmatprep.subr.mxu0 0.0
    %770 = vmatpush1.msra.mxu0 0.0
    %771 = vmatprep.subr.mxu0 0.0
    %772 = vmatpush1.msra.mxu0 0.0
    %773 = vmatprep.subr.mxu0 0.0
    %774 = vmatpush1.msra.mxu0 0.0
    %775 = vmatprep.subr.mxu0 0.0
    %776 = vmatpush1.msra.mxu0 0.0
    %777 = vmatprep.subr.mxu0 0.0
    %778 = vmatpush1.msra.mxu0 0.0
    %779 = vmatprep.subr.mxu0 0.0
    %780 = vmatpush1.msra.mxu0 0.0
    %781 = vmatprep.subr.mxu0 0.0
    %782 = vmatpush1.msra.mxu0 0.0
    %783 = vmatprep.subr.mxu0 0.0
    %784 = vmatpush1.msra.mxu0 0.0
    %785 = vmatprep.subr.mxu0 0.0
    %786 = vmatpush1.msra.mxu0 0.0
    %787 = vmatprep.subr.mxu0 0.0
    %788 = vmatpush1.msra.mxu0 0.0
    %789 = vmatprep.subr.mxu0 0.0
    %790 = vmatpush1.msra.mxu0 0.0
    %791 = vmatprep.subr.mxu0 0.0
    %792 = vmatpush1.msra.mxu0 0.0
    %793 = vmatprep.subr.mxu0 0.0
    %794 = vmatpush1.msra.mxu0 0.0
    %795 = vmatprep.subr.mxu0 0.0
    %796 = vmatpush1.msra.mxu0 0.0
    %797 = vmatprep.subr.mxu0 0.0
    %798 = vmatpush1.msra.mxu0 0.0
    %799 = vmatprep.subr.mxu0 0.0
    %800 = vmatpush1.msra.mxu0 0.0
    %801 = vmatprep.subr.mxu0 0.0
    %802 = vmatpush1.msra.mxu0 0.0
    %803 = vmatprep.subr.mxu0 0.0
    %804 = vmatpush1.msra.mxu0 0.0
    %805 = vmatprep.subr.mxu0 0.0
    %806 = vmatpush1.msra.mxu0 0.0
    %807 = vmatprep.subr.mxu0 0.0
    %808 = vmatpush1.msra.mxu0 0.0
    %809 = vmatprep.subr.mxu0 0.0
    %810 = vmatpush1.msra.mxu0 0.0
    %811 = vmatprep.subr.mxu0 0.0
    %812 = vmatpush1.msra.mxu0 0.0
    %813 = vmatprep.subr.mxu0 0.0
    %814 = vmatpush1.msra.mxu0 0.0
    %815 = vmatprep.subr.mxu0 0.0
    %816 = vmatpush1.msra.mxu0 0.0
    %817 = vmatprep.subr.mxu0 0.0
    %818 = vmatpush1.msra.mxu0 0.0
    %819 = vmatprep.subr.mxu0 0.0
    %820 = vmatpush1.msra.mxu0 0.0
    %821 = vmatprep.subr.mxu0 0.0
    %822 = vmatpush1.msra.mxu0 0.0
    %823 = vmatprep.subr.mxu0 0.0
    %824 = vmatpush1.msra.mxu0 0.0
    %825 = vmatprep.subr.mxu0 0.0
    %826 = vmatpush1.msra.mxu0 0.0
    %827 = vmatprep.mubr.f32.mxu0 0.0
    %v828 = vand.u32 %v599, 4294901760
    %v829 = vsub.f32 %v599, %v828
    %830 = vmatmul.mubr.f32.gmra.mrb[0].mxu0 %v829
    %v831 = vpop.f32.mrb[0].mxu0
    %v832 = vadd.f32 %v756, %v831
    %v833 = vpop.f32.mrb[0].mxu0
    %834 = vdwg.mxu0
    %835 = vmatprep.subr.mxu0 0.0
    %v836 = vand.u32 %v593, 4294901760
    %837 = vmatpush1.msra.mxu0 %v836
    %838 = vmatprep.subr.mxu0 0.0
    %v839 = vand.u32 %v594, 4294901760
    %840 = vmatpush1.msra.mxu0 %v839
    %841 = vmatprep.subr.mxu0 0.0
    %842 = vmatpush1.msra.mxu0 0.0
    %843 = vmatprep.subr.mxu0 0.0
    %844 = vmatpush1.msra.mxu0 0.0
    %845 = vmatprep.subr.mxu0 0.0
    %846 = vmatpush1.msra.mxu0 0.0
    %847 = vmatprep.subr.mxu0 0.0
    %848 = vmatpush1.msra.mxu0 0.0
    %849 = vmatprep.subr.mxu0 0.0
    %850 = vmatpush1.msra.mxu0 0.0
    %851 = vmatprep.subr.mxu0 0.0
    %852 = vmatpush1.msra.mxu0 0.0
    %853 = vmatprep.subr.mxu0 0.0
    %854 = vmatpush1.msra.mxu0 0.0
    %855 = vmatprep.subr.mxu0 0.0
    %856 = vmatpush1.msra.mxu0 0.0
    %857 = vmatprep.subr.mxu0 0.0
    %858 = vmatpush1.msra.mxu0 0.0
    %859 = vmatprep.subr.mxu0 0.0
    %860 = vmatpush1.msra.mxu0 0.0
    %861 = vmatprep.subr.mxu0 0.0
    %862 = vmatpush1.msra.mxu0 0.0
    %863 = vmatprep.subr.mxu0 0.0
    %864 = vmatpush1.msra.mxu0 0.0
    %865 = vmatprep.subr.mxu0 0.0
    %866 = vmatpush1.msra.mxu0 0.0
    %867 = vmatprep.subr.mxu0 0.0
    %868 = vmatpush1.msra.mxu0 0.0
    %869 = vmatprep.subr.mxu0 0.0
    %870 = vmatpush1.msra.mxu0 0.0
    %871 = vmatprep.subr.mxu0 0.0
    %872 = vmatpush1.msra.mxu0 0.0
    %873 = vmatprep.subr.mxu0 0.0
    %874 = vmatpush1.msra.mxu0 0.0
    %875 = vmatprep.subr.mxu0 0.0
    %876 = vmatpush1.msra.mxu0 0.0
    %877 = vmatprep.subr.mxu0 0.0
    %878 = vmatpush1.msra.mxu0 0.0
    %879 = vmatprep.subr.mxu0 0.0
    %880 = vmatpush1.msra.mxu0 0.0
    %881 = vmatprep.subr.mxu0 0.0
    %882 = vmatpush1.msra.mxu0 0.0
    %883 = vmatprep.subr.mxu0 0.0
    %884 = vmatpush1.msra.mxu0 0.0
    %885 = vmatprep.subr.mxu0 0.0
    %886 = vmatpush1.msra.mxu0 0.0
    %887 = vmatprep.subr.mxu0 0.0
    %888 = vmatpush1.msra.mxu0 0.0
    %889 = vmatprep.subr.mxu0 0.0
    %890 = vmatpush1.msra.mxu0 0.0
    %891 = vmatprep.subr.mxu0 0.0
    %892 = vmatpush1.msra.mxu0 0.0
    %893 = vmatprep.subr.mxu0 0.0
    %894 = vmatpush1.msra.mxu0 0.0
    %895 = vmatprep.subr.mxu0 0.0
    %896 = vmatpush1.msra.mxu0 0.0
    %897 = vmatprep.subr.mxu0 0.0
    %898 = vmatpush1.msra.mxu0 0.0
    %899 = vmatprep.subr.mxu0 0.0
    %900 = vmatpush1.msra.mxu0 0.0
    %901 = vmatprep.mubr.f32.mxu0 0.0
    %v902 = vand.u32 %v599, 4294901760
    %v903 = vsub.f32 %v599, %v902
    %v904 = vand.u32 %v903, 4294901760
    %905 = vmatmul.mubr.f32.gmra.mrb[0].mxu0 %v904
    %v906 = vpop.f32.mrb[0].mxu0
    %v907 = vadd.f32 %v832, %v906
    %v908 = vpop.f32.mrb[0].mxu0
    %909 = vdwg.mxu0
    %910 = vmatprep.subr.mxu0 0.0
    %v911 = vand.u32 %v593, 4294901760
    %v912 = vsub.f32 %v593, %v911
    %v913 = vand.u32 %v912, 4294901760
    %914 = vmatpush1.msra.mxu0 %v913
    %915 = vmatprep.subr.mxu0 0.0
    %v916 = vand.u32 %v594, 4294901760
    %v917 = vsub.f32 %v594, %v916
    %v918 = vand.u32 %v917, 4294901760
    %919 = vmatpush1.msra.mxu0 %v918
    %920 = vmatprep.subr.mxu0 0.0
    %921 = vmatpush1.msra.mxu0 0.0
    %922 = vmatprep.subr.mxu0 0.0
    %923 = vmatpush1.msra.mxu0 0.0
    %924 = vmatprep.subr.mxu0 0.0
    %925 = vmatpush1.msra.mxu0 0.0
    %926 = vmatprep.subr.mxu0 0.0
    %927 = vmatpush1.msra.mxu0 0.0
    %928 = vmatprep.subr.mxu0 0.0
    %929 = vmatpush1.msra.mxu0 0.0
    %930 = vmatprep.subr.mxu0 0.0
    %931 = vmatpush1.msra.mxu0 0.0
    %932 = vmatprep.subr.mxu0 0.0
    %933 = vmatpush1.msra.mxu0 0.0
    %934 = vmatprep.subr.mxu0 0.0
    %935 = vmatpush1.msra.mxu0 0.0
    %936 = vmatprep.subr.mxu0 0.0
    %937 = vmatpush1.msra.mxu0 0.0
    %938 = vmatprep.subr.mxu0 0.0
    %939 = vmatpush1.msra.mxu0 0.0
    %940 = vmatprep.subr.mxu0 0.0
    %941 = vmatpush1.msra.mxu0 0.0
    %942 = vmatprep.subr.mxu0 0.0
    %943 = vmatpush1.msra.mxu0 0.0
    %944 = vmatprep.subr.mxu0 0.0
    %945 = vmatpush1.msra.mxu0 0.0
    %946 = vmatprep.subr.mxu0 0.0
    %947 = vmatpush1.msra.mxu0 0.0
    %948 = vmatprep.subr.mxu0 0.0
    %949 = vmatpush1.msra.mxu0 0.0
    %950 = vmatprep.subr.mxu0 0.0
    %951 = vmatpush1.msra.mxu0 0.0
    %952 = vmatprep.subr.mxu0 0.0
    %953 = vmatpush1.msra.mxu0 0.0
    %954 = vmatprep.subr.mxu0 0.0
    %955 = vmatpush1.msra.mxu0 0.0
    %956 = vmatprep.subr.mxu0 0.0
    %957 = vmatpush1.msra.mxu0 0.0
    %958 = vmatprep.subr.mxu0 0.0
    %959 = vmatpush1.msra.mxu0 0.0
    %960 = vmatprep.subr.mxu0 0.0
    %961 = vmatpush1.msra.mxu0 0.0
    %962 = vmatprep.subr.mxu0 0.0
    %963 = vmatpush1.msra.mxu0 0.0
    %964 = vmatprep.subr.mxu0 0.0
    %965 = vmatpush1.msra.mxu0 0.0
    %966 = vmatprep.subr.mxu0 0.0
    %967 = vmatpush1.msra.mxu0 0.0
    %968 = vmatprep.subr.mxu0 0.0
    %969 = vmatpush1.msra.mxu0 0.0
    %970 = vmatprep.subr.mxu0 0.0
    %971 = vmatpush1.msra.mxu0 0.0
    %972 = vmatprep.subr.mxu0 0.0
    %973 = vmatpush1.msra.mxu0 0.0
    %974 = vmatprep.subr.mxu0 0.0
    %975 = vmatpush1.msra.mxu0 0.0
    %976 = vmatprep.subr.mxu0 0.0
    %977 = vmatpush1.msra.mxu0 0.0
    %978 = vmatprep.subr.mxu0 0.0
    %979 = vmatpush1.msra.mxu0 0.0
    %980 = vmatprep.mubr.f32.mxu0 0.0
    %v981 = vand.u32 %v599, 4294901760
    %982 = vmatmul.mubr.f32.gmra.mrb[0].mxu0 %v981
    %v983 = vpop.f32.mrb[0].mxu0
    %v984 = vadd.f32 %v907, %v983
    %v985 = vpop.f32.mrb[0].mxu0
    %986 = vdwg.mxu0
    %987 = vmatprep.subr.mxu0 0.0
    %v988 = vand.u32 %v593, 4294901760
    %989 = vmatpush1.msra.mxu0 %v988
    %990 = vmatprep.subr.mxu0 0.0
    %v991 = vand.u32 %v594, 4294901760
    %992 = vmatpush1.msra.mxu0 %v991
    %993 = vmatprep.subr.mxu0 0.0
    %994 = vmatpush1.msra.mxu0 0.0
    %995 = vmatprep.subr.mxu0 0.0
    %996 = vmatpush1.msra.mxu0 0.0
    %997 = vmatprep.subr.mxu0 0.0
    %998 = vmatpush1.msra.mxu0 0.0
    %999 = vmatprep.subr.mxu0 0.0
    %1000 = vmatpush1.msra.mxu0 0.0
    %1001 = vmatprep.subr.mxu0 0.0
    %1002 = vmatpush1.msra.mxu0 0.0
    %1003 = vmatprep.subr.mxu0 0.0
    %1004 = vmatpush1.msra.mxu0 0.0
    %1005 = vmatprep.subr.mxu0 0.0
    %1006 = vmatpush1.msra.mxu0 0.0
    %1007 = vmatprep.subr.mxu0 0.0
    %1008 = vmatpush1.msra.mxu0 0.0
    %1009 = vmatprep.subr.mxu0 0.0
    %1010 = vmatpush1.msra.mxu0 0.0
    %1011 = vmatprep.subr.mxu0 0.0
    %1012 = vmatpush1.msra.mxu0 0.0
    %1013 = vmatprep.subr.mxu0 0.0
    %1014 = vmatpush1.msra.mxu0 0.0
    %1015 = vmatprep.subr.mxu0 0.0
    %1016 = vmatpush1.msra.mxu0 0.0
    %1017 = vmatprep.subr.mxu0 0.0
    %1018 = vmatpush1.msra.mxu0 0.0
    %1019 = vmatprep.subr.mxu0 0.0
    %1020 = vmatpush1.msra.mxu0 0.0
    %1021 = vmatprep.subr.mxu0 0.0
    %1022 = vmatpush1.msra.mxu0 0.0
    %1023 = vmatprep.subr.mxu0 0.0
    %1024 = vmatpush1.msra.mxu0 0.0
    %1025 = vmatprep.subr.mxu0 0.0
    %1026 = vmatpush1.msra.mxu0 0.0
    %1027 = vmatprep.subr.mxu0 0.0
    %1028 = vmatpush1.msra.mxu0 0.0
    %1029 = vmatprep.subr.mxu0 0.0
    %1030 = vmatpush1.msra.mxu0 0.0
    %1031 = vmatprep.subr.mxu0 0.0
    %1032 = vmatpush1.msra.mxu0 0.0
    %1033 = vmatprep.subr.mxu0 0.0
    %1034 = vmatpush1.msra.mxu0 0.0
    %1035 = vmatprep.subr.mxu0 0.0
    %1036 = vmatpush1.msra.mxu0 0.0
    %1037 = vmatprep.subr.mxu0 0.0
    %1038 = vmatpush1.msra.mxu0 0.0
    %1039 = vmatprep.subr.mxu0 0.0
    %1040 = vmatpush1.msra.mxu0 0.0
    %1041 = vmatprep.subr.mxu0 0.0
    %1042 = vmatpush1.msra.mxu0 0.0
    %1043 = vmatprep.subr.mxu0 0.0
    %1044 = vmatpush1.msra.mxu0 0.0
    %1045 = vmatprep.subr.mxu0 0.0
    %1046 = vmatpush1.msra.mxu0 0.0
    %1047 = vmatprep.subr.mxu0 0.0
    %1048 = vmatpush1.msra.mxu0 0.0
    %1049 = vmatprep.subr.mxu0 0.0
    %1050 = vmatpush1.msra.mxu0 0.0
    %1051 = vmatprep.subr.mxu0 0.0
    %1052 = vmatpush1.msra.mxu0 0.0
    %1053 = vmatprep.mubr.f32.mxu0 0.0
    %v1054 = vand.u32 %v599, 4294901760
    %1055 = vmatmul.mubr.f32.gmra.mrb[0].mxu0 %v1054
    %v1056 = vpop.f32.mrb[0].mxu0
    %v1057 = vadd.f32 %v984, %v1056
    %v1058 = vpop.f32.mrb[0].mxu0
    %1059 = vdwg.mxu0
    %v1062 = vunpack.c.l.s4 1966171168
    %v1063 = vunpack.c.0.s8 %v1062
    %v1064 = vlaneseq
    %v1065 = vshrl.u32 %v1064, 7
    %v1066 = vsub.s32 %v1063, %v1065
    %v1067 = vrot.slane %v1057, %v1066
    %v1068 = vcombine.high %v1067, %v1067
    %v1070 = vunpack.c.l.s4 1966171168
    %v1071 = vunpack.c.0.s8 %v1070
    %v1072 = vlaneseq
    %v1073 = vshrl.u32 %v1072, 7
    %v1074 = vsub.s32 %v1071, %v1073
    %v1075 = vrot.slane %v1067, %v1074
    %v1077 = vunpack.c.l.s4 1966171168
    %v1078 = vunpack.c.0.s8 %v1077
    %v1079 = vlaneseq
    %v1080 = vshrl.u32 %v1079, 7
    %v1081 = vsub.s32 %v1078, %v1080
    %v1082 = vrot.slane %v1068, %v1081
    %v1083 = vlaneseq
    %v1084 = vshrl.u32 %v1083, 7
    %v1085 = vsub.s32 0, %v1084
    %v1086 = vrot.slane %v1075, %v1085
    %v1087 = vlaneseq
    %v1088 = vshrl.u32 %v1087, 7
    %v1089 = vsub.s32 0, %v1088
    %v1090 = vrot.slane %v1082, %v1089
    %v1093 = vmul.f32 %v570, %v1086
    %v1094 = vmul.f32 %v576, %v1090
    %v1095 = vtanh.pop %v1093
    %v1096 = vtanh.pop %v1094
    %vm1097 = vcmask 457728
    %1098 = vst.msk [vmem:[#allocation8] sm:$0xff] %vm1097, %v1095
    %1099 = vst.msk [vmem:[#allocation8 + $0x8] sm:$0xff] %vm1097, %v1096
    // Predicated region
    $region30: #{tpu_custom_call.1} parent=1 // pred_check
      _
    $region31: #{tpu_custom_call.1} parent=1 // pred_check_branch
      %1101 = sbr.rel (0) target = $region33
    $region32: #{tpu_custom_call.1} parent=1 // pred_region
      %s1103 = ssub.s32 256, 256
      %1104 = vsyncadd [#allocation4], %s1103
      %s1105 = sshll.u32 [#allocation8], 4
      %s1106 = int_to_ptr.vmem [resolvable:$true] %s1105
      %1111 = dma.vmem_to_hbm [thread:$0]  %s1106, 256, %s4, [#allocation4], 128, 128, 8
    $region33: #{tpu_custom_call.1} parent=1 // pred_fallthru
      _
    // Predicated region
    $region34: #{tpu_custom_call.1} parent=1 // pred_check
      _
    $region35: #{tpu_custom_call.1} parent=1 // pred_check_branch
      %1113 = sbr.rel (0) target = $region37
    $region36: #{tpu_custom_call.1} parent=1 // pred_region
      %1114 = dma.done [#allocation4], 256
    $region37: #{tpu_custom_call.1} parent=1 // pred_fallthru
      _
    %1115 = vsyncpa [#allocation3], 1
    %1116 = vsyncpa [#allocation6], 1
    %1117 = vsyncpa [#allocation4], 1

</llo_original>
